<compile_context>
chip_gen: v6e
topology: v6e:2x2x1
jax: 0.10.0
libtpu: 0.0.40
codegen_flags: <defaults>
</compile_context>

<pallas_src>
import functools
import math

import numpy as np
import jax
import jax.numpy as jnp
from jax.experimental import pallas as pl
from jax.experimental.pallas import tpu as pltpu


# Safe on v5e/v6e (128 MiB physical) and v7x (64 MiB per TC); do not raise on
# v7x without re-deriving the per-step working set.
_VMEM_LIMIT_BYTES = 32 * 1024 * 1024
_BUFFER_BUDGET_BYTES = 12 * 1024 * 1024   # in+out, double-buffered, all fused arrays
_TARGET_GRID_STEPS = 8                    # >= 4 pipelined steps per TC on v7x (2 TCs)
_MIN_TILE_ROWS = 512                      # ~256 KiB/buffer at 128 f32 lanes: near roofline
_SOFTMAX_PALLAS_MIN_ELEMS = 4096          # below this a pallas_call is launch-bound overhead


def _neutral_min(dtype):
    """Identity element for `max` in dtype (window padding value)."""
    if jnp.issubdtype(dtype, jnp.floating):
        return jnp.array(-jnp.inf, dtype=dtype)
    if jnp.issubdtype(dtype, jnp.bool_):
        return jnp.array(False, dtype=dtype)
    return jnp.array(jnp.iinfo(dtype).min, dtype=dtype)


def _sublane_multiple(min_itemsize):
    """Sublane packing multiple: 8 for 4-byte, 16 for 2-byte, 32 for 1-byte dtypes."""
    return max(8, 32 // max(1, int(min_itemsize)))


def _row_tile(rows, row_bytes, sublane):
    """Row-tile height for a row-streaming kernel.

    Largest tile whose double-buffered in+out (all fused arrays; `row_bytes`
    per row total) fits the VMEM budget, capped so large inputs get at least
    _TARGET_GRID_STEPS grid steps (>= 4 pipelined steps per v7x TensorCore)
    without ever shrinking the tile below _MIN_TILE_ROWS rows.
    """
    tm = max(sublane, _BUFFER_BUDGET_BYTES // max(1, 4 * row_bytes))
    tm = min(tm, max(_MIN_TILE_ROWS, pl.cdiv(rows, _TARGET_GRID_STEPS)))
    if tm >= rows:
        return rows                                # single full block
    return max(sublane, (tm // sublane) * sublane)


# ------------------------- max-pool (dilation) kernel -------------------------

def _cover_offsets(target):
    """Static shift offsets of a log-depth doubling chain reaching `target` cover."""
    offs, cover = [], 1
    while cover < target:
        step = min(cover, target - cover)
        offs.append(step)
        cover += step
    return offs


def _maxpool_lanes_kernel(*refs, k, W, n):
    """Width-k (odd) stride-1 'same' sliding max along length-W segments on lanes.

    Block shape is (TM, L) with L = g*W: g consecutive logical rows are folded
    onto the lane axis so every store is lane-dense; `lane % W` masks keep
    windows from crossing row boundaries.  The window max is the combination
    of a right cover rc[w] = max(x[w .. w+half]) and a left cover
    lc[w] = max(x[w-half .. w]) (both clipped to the segment), each built with
    a masked log-depth shift/max doubling chain -- this covers the full
    clipped window [w-half .. w+half] including the left edge.
    """
    in_refs, out_refs = refs[:n], refs[n:]
    half = k // 2
    L = in_refs[0].shape[-1]
    offsets = _cover_offsets(half + 1)                 # e.g. [1, 2] for k = 7

    # Hoisted boundary masks: one iota / mod / compare set, shared by all
    # fused arrays (offsets and W are static).
    pos = jax.lax.broadcasted_iota(jnp.int32, (1, L), 1) % W
    right_valid = {off: pos < (W - off) for off in offsets}   # lane w+off in same segment
    left_valid = {off: pos >= off for off in offsets}         # lane w-off in same segment

    # NOTE: jnp.roll with a static shift lowers to lane slices/concat and is
    # portable (interpret mode included); pltpu.roll(v, shift=(L-off) % L,
    # axis=-1) is the explicit-XLU alternative if the VALU ever becomes the
    # bottleneck (only plausible on v7x; kernel is HBM-bound on v5e/v6e).
    for x_ref, o_ref in zip(in_refs, out_refs):
        x = x_ref[...]
        neg = _neutral_min(x.dtype)
        rc = x                                          # covers [w .. w+cover-1] clipped
        for off in offsets:
            rc = jnp.maximum(
                rc, jnp.where(right_valid[off], jnp.roll(rc, -off, axis=-1), neg))
        lc = x                                          # covers [w-cover+1 .. w] clipped
        for off in offsets:
            lc = jnp.maximum(
                lc, jnp.where(left_valid[off], jnp.roll(lc, off, axis=-1), neg))
        o_ref[...] = jnp.maximum(rc, lc)


def _maxpool_lastdim_fused(xs, k):
    """Width-k (odd) stride-1 'same' sliding max along the last dim of every
    array in `xs` (all same shape), computed in a single pallas_call."""
    assert k % 2 == 1, "only odd pooling windows supported"
    # TODO(synk): even kernel widths with ceil_mode change the output width; not needed for max_pool=[1,7].
    xs = list(xs)
    if k == 1:
        return xs
    if len(xs) > 1 and any(x.shape != xs[0].shape for x in xs):
        return [_maxpool_lastdim_fused([x], k)[0] for x in xs]

    shape = xs[0].shape
    W = int(shape[-1])
    rows = int(np.prod(shape[:-1])) if len(shape) > 1 else 1

    # Fold g consecutive rows onto lanes so the lane extent is a multiple of
    # 128 (unmasked, lane-dense stores).  If rows % g != 0 pad a few rows and
    # slice back afterwards instead of falling back to g = 1: the pad/slice
    # only materializes when actually needed, while masked partial stores are
    # the bigger measured cost.
    g = math.lcm(W, 128) // W
    rows_pad = ((rows + g - 1) // g) * g
    R, L = rows_pad // g, g * W

    xs2 = []
    for x in xs:
        x2 = x.reshape(rows, W)
        if rows_pad != rows:
            x2 = jnp.pad(x2, ((0, rows_pad - rows), (0, 0)))
        xs2.append(x2.reshape(R, L))

    itemsizes = [int(x.dtype.itemsize) for x in xs]
    row_bytes = L * sum(itemsizes)                  # one copy of every fused array per row
    sublane = _sublane_multiple(min(itemsizes))     # 8 f32 / 16 bf16 / 32 int8,bool
    tm = _row_tile(R, row_bytes, sublane)
    grid = (pl.cdiv(R, tm),)
    block = pl.BlockSpec((tm, L), lambda i: (i, 0))

    outs = pl.pallas_call(
        functools.partial(_maxpool_lanes_kernel, k=k, W=W, n=len(xs)),
        out_shape=[jax.ShapeDtypeStruct((R, L), x.dtype) for x in xs],
        grid_spec=pltpu.PrefetchScalarGridSpec(
            num_scalar_prefetch=0,
            grid=grid,
            in_specs=[block] * len(xs),
            out_specs=[block] * len(xs),
        ),
        compiler_params=pltpu.CompilerParams(
            dimension_semantics=("parallel",),
            vmem_limit_bytes=_VMEM_LIMIT_BYTES,
        ),
        # NOTE: input_output_aliases={i: i} would drop the extra HBM output
        # buffers, but callers may still hold the pre-dilation seg maps (the
        # self-check below does), so outputs stay distinct.
    )(*xs2)

    outs2 = []
    for o in outs:
        o = o.reshape(rows_pad, W)
        if rows_pad != rows:
            o = o[:rows]
        outs2.append(o.reshape(shape))
    return outs2


def dilation_fused(xs, max_pool):
    """nn.MaxPool2d(kernel=max_pool, stride=1, padding=max_pool//2, ceil_mode=True)
    applied to every array in xs with a single kernel launch per pooled axis."""
    kh, kw = int(max_pool[0]), int(max_pool[1])
    xs = list(xs)
    if kw > 1:
        xs = _maxpool_lastdim_fused(xs, kw)
    if kh > 1:
        # TODO(synk): if this path ever gets hot, pool H in-kernel with sublane
        # shifts instead of paying two full HBM transposes.  Default [1,7]
        # never takes this branch.
        xs = [jnp.swapaxes(x, -1, -2) for x in xs]
        xs = _maxpool_lastdim_fused(xs, kh)
        xs = [jnp.swapaxes(x, -1, -2) for x in xs]
    return xs


# ------------------------------ softmax kernel ------------------------------

def _softmax_axis1_kernel(x_ref, o_ref):
    # Block is (1, C, TL): C on sublanes, spatial on lanes -> lane-dense stores.
    x = x_ref[...].astype(jnp.float32)
    m = jnp.max(x, axis=1, keepdims=True)
    e = jnp.exp(x - m)
    s = jnp.sum(e, axis=1, keepdims=True)
    o_ref[...] = (e / s).astype(o_ref.dtype)


def _softmax_dim1(x):
    """torch.softmax(x, dim=1)."""
    shape = x.shape
    B, C = int(shape[0]), int(shape[1])
    S = int(np.prod(shape[2:])) if x.ndim > 2 else 1
    if S < 128 or x.size < _SOFTMAX_PALLAS_MIN_ELEMS:
        # Tiny cls heads (e.g. (N, 4)) are launch-bound: a dedicated
        # pallas_call is pure overhead, so let XLA fuse the softmax instead.
        return jax.nn.softmax(x, axis=1)
    x3 = x.reshape(B, C, S)
    itm = max(int(x.dtype.itemsize), 4)                 # kernel computes in f32
    tl = _BUFFER_BUDGET_BYTES // max(1, 4 * C * itm)    # in+out, double-buffered
    tl = min(tl,
             max(1024, pl.cdiv(S, _TARGET_GRID_STEPS)),  # several pipelined steps on big S
             (S // 128) * 128)                           # never exceed S
    tl = max(128, (tl // 128) * 128)                     # lane-dense multiple of 128
    grid = (B, pl.cdiv(S, tl))
    out = pl.pallas_call(
        _softmax_axis1_kernel,
        out_shape=jax.ShapeDtypeStruct((B, C, S), x.dtype),
        grid_spec=pltpu.PrefetchScalarGridSpec(
            num_scalar_prefetch=0,
            grid=grid,
            in_specs=[pl.BlockSpec((1, C, tl), lambda b, l: (b, 0, l))],
            out_specs=pl.BlockSpec((1, C, tl), lambda b, l: (b, 0, l)),
        ),
        compiler_params=pltpu.CompilerParams(
            dimension_semantics=("parallel", "parallel"),
            vmem_limit_bytes=_VMEM_LIMIT_BYTES,
        ),
    )(x3)
    return out.reshape(shape)


_SOFTMAX_KEYS = ('ett', 'ngt')


def _apply_cls_softmax(cls_dict):
    out = dict(cls_dict)
    for kname in out:
        if kname in _SOFTMAX_KEYS:
            out[kname] = _softmax_dim1(out[kname])
    return out


# ---------------------------- module forward pass ----------------------------

def dilate_softmax_postprocess(output, target, max_pool=(1, 7)):
    """Forward pass of DilateSoftmaxPostProcess (functional; inputs untouched)."""
    out = dict(output)
    tgt = dict(target)
    # SoftmaxPostProcess: softmax over dim=1 for the 'ett' / 'ngt' cls heads.
    if 'cls' in out:
        out['cls'] = _apply_cls_softmax(out['cls'])
    # DilateSoftmaxPostProcess: dilate (max-pool) seg maps if target has 'seg'.
    if 'seg' in tgt:
        out_seg, tgt_seg = dilation_fused([out['seg'], tgt['seg']], max_pool)
        out['seg'] = out_seg
        tgt['seg'] = tgt_seg
    return out, tgt


# ---------------------------------- driver -----------------------------------

if __name__ == "__main__":
    key = jax.random.PRNGKey(0)
    k1, k2, k3, k4, k5, k6, k7, k8 = jax.random.split(key, 8)
    N, Ccls, Cseg, H, W = 2, 4, 3, 16, 16

    output = {
        'cls': {
            'ett': jax.random.normal(k1, (N, Ccls), jnp.float32),
            'ngt': jax.random.normal(k2, (N, Ccls), jnp.float32),
            'other': jax.random.normal(k3, (N, Ccls), jnp.float32),  # untouched key
        },
        'seg': jax.random.normal(k4, (N, Cseg, H, W), jnp.float32),
    }
    target = {
        'seg': (jax.random.uniform(k5, (N, Cseg, H, W)) > 0.5).astype(jnp.float32),
    }

    out, tgt = dilate_softmax_postprocess(output, target, max_pool=(1, 7))
    jax.block_until_ready((out, tgt))

    # ---------------------- pure-JAX reference checks ----------------------
    def ref_pool_w(x, k):
        half = k // 2
        pad = [(0, 0)] * (x.ndim - 1) + [(half, half)]
        xp = jnp.pad(x, pad, constant_values=-jnp.inf)
        return jnp.max(jnp.stack([xp[..., i:i + x.shape[-1]] for i in range(k)], 0), 0)

    np.testing.assert_allclose(np.asarray(out['seg']),
                               np.asarray(ref_pool_w(output['seg'], 7)), rtol=1e-6)
    np.testing.assert_allclose(np.asarray(tgt['seg']),
                               np.asarray(ref_pool_w(target['seg'], 7)), rtol=1e-6)
    np.testing.assert_allclose(np.asarray(out['cls']['ett']),
                               np.asarray(jax.nn.softmax(output['cls']['ett'], axis=1)),
                               rtol=1e-5, atol=1e-6)
    np.testing.assert_allclose(np.asarray(out['cls']['ngt']),
                               np.asarray(jax.nn.softmax(output['cls']['ngt'], axis=1)),
                               rtol=1e-5, atol=1e-6)
    np.testing.assert_allclose(np.asarray(out['cls']['other']),
                               np.asarray(output['cls']['other']))

    # Row-padding path (rows % g != 0) with a non-128-multiple W.
    x_odd = jax.random.normal(k6, (2, 3, 15, 20), jnp.float32)
    y_odd, = dilation_fused([x_odd], (1, 7))
    np.testing.assert_allclose(np.asarray(y_odd), np.asarray(ref_pool_w(x_odd, 7)),
                               rtol=1e-6)

    # Degenerate width W < kernel width (whole-row maxima must propagate).
    x_nar = jax.random.normal(k7, (1, 2, 8, 4), jnp.float32)
    y_nar, = dilation_fused([x_nar], (1, 7))
    np.testing.assert_allclose(np.asarray(y_nar), np.asarray(ref_pool_w(x_nar, 7)),
                               rtol=1e-6)

    # Large cls head exercises the Pallas softmax path (spatial on lanes).
    x_big = jax.random.normal(k8, (2, 4, 8, 64), jnp.float32)
    y_big = _softmax_dim1(x_big)
    jax.block_until_ready(y_big)
    np.testing.assert_allclose(np.asarray(y_big),
                               np.asarray(jax.nn.softmax(x_big, axis=1)),
                               rtol=1e-5, atol=1e-6)

    print("KERNEL_OK")
</pallas_src>

<mosaic_0001>
module attributes {stable_mosaic.version = 11 : i64} {
  func.func @_maxpool_lanes_kernel(%arg0: i32, %arg1: memref<12x128xf32, #tpu.memory_space<vmem>>, %arg2: memref<12x128xf32, #tpu.memory_space<vmem>>, %arg3: memref<12x128xf32, #tpu.memory_space<vmem>>, %arg4: memref<12x128xf32, #tpu.memory_space<vmem>>) attributes {dimension_semantics = [#tpu.dimension_semantics<parallel>], iteration_bounds = array<i64: 1>, scalar_prefetch = 0 : i64, scratch_operands = 0 : i64, tpu.core_type = #tpu.core_type<tc>, window_params = [{transform_indices = @transform_0, window_bounds = array<i64: 12, 128>}, {transform_indices = @transform_1, window_bounds = array<i64: 12, 128>}, {transform_indices = @transform_2, window_bounds = array<i64: 12, 128>}, {transform_indices = @transform_3, window_bounds = array<i64: 12, 128>}]} {
    %0 = tpu.iota {dimensions = array<i32: 1>} : vector<1x128xi32>
    %c16_i32 = arith.constant 16 : i32
    %c0_i32 = arith.constant 0 : i32
    %1 = arith.cmpi eq, %c16_i32, %c0_i32 : i32
    %c1_i32 = arith.constant 1 : i32
    %2 = arith.select %1, %c1_i32, %c16_i32 : i32
    %3 = vector.broadcast %2 : i32 to vector<1x128xi32>
    %4 = arith.remsi %0, %3 : vector<1x128xi32>
    %c0_i32_0 = arith.constant 0 : i32
    %5 = vector.broadcast %c0_i32_0 : i32 to vector<1x128xi32>
    %6 = arith.cmpi ne, %4, %5 : vector<1x128xi32>
    %c0_i32_1 = arith.constant 0 : i32
    %7 = vector.broadcast %c0_i32_1 : i32 to vector<1x128xi32>
    %8 = arith.cmpi slt, %4, %7 : vector<1x128xi32>
    %c0_i32_2 = arith.constant 0 : i32
    %9 = arith.cmpi slt, %2, %c0_i32_2 : i32
    %10 = vector.broadcast %9 : i1 to vector<1x128xi1>
    %11 = vector.broadcast %10 : vector<1x128xi1> to vector<1x128xi1>
    %12 = arith.xori %8, %11 : vector<1x128xi1>
    %13 = arith.andi %12, %6 : vector<1x128xi1>
    %14 = vector.broadcast %2 : i32 to vector<1x128xi32>
    %15 = arith.addi %4, %14 : vector<1x128xi32>
    %16 = arith.select %13, %15, %4 : vector<1x128xi1>, vector<1x128xi32>
    %c15_i32 = arith.constant 15 : i32
    %17 = vector.broadcast %c15_i32 : i32 to vector<1x128xi32>
    %18 = arith.cmpi slt, %16, %17 : vector<1x128xi32>
    %c14_i32 = arith.constant 14 : i32
    %19 = vector.broadcast %c14_i32 : i32 to vector<1x128xi32>
    %20 = arith.cmpi slt, %16, %19 : vector<1x128xi32>
    %c1_i32_3 = arith.constant 1 : i32
    %21 = vector.broadcast %c1_i32_3 : i32 to vector<1x128xi32>
    %22 = arith.cmpi sge, %16, %21 : vector<1x128xi32>
    %c2_i32 = arith.constant 2 : i32
    %23 = vector.broadcast %c2_i32 : i32 to vector<1x128xi32>
    %24 = arith.cmpi sge, %16, %23 : vector<1x128xi32>
    %c0 = arith.constant 0 : index
    %c0_4 = arith.constant 0 : index
    %25 = vector.load %arg1[%c0, %c0_4] : memref<12x128xf32, #tpu.memory_space<vmem>>, vector<12x128xf32>
    %26 = vector.extract_strided_slice %25 {offsets = [0, 1], sizes = [12, 127], strides = [1, 1]} : vector<12x128xf32> to vector<12x127xf32>
    %27 = vector.extract_strided_slice %25 {offsets = [0, 0], sizes = [12, 1], strides = [1, 1]} : vector<12x128xf32> to vector<12x1xf32>
    %28 = tpu.concatenate %26, %27 in 1 : vector<12x127xf32>, vector<12x1xf32> -> vector<12x128xf32>
    %cst = arith.constant 0xFF800000 : f32
    %29 = vector.shape_cast %18 : vector<1x128xi1> to vector<1x128xi1>
    %30 = vector.broadcast %29 : vector<1x128xi1> to vector<12x128xi1>
    %31 = vector.broadcast %cst : f32 to vector<12x128xf32>
    %32 = arith.select %30, %28, %31 : vector<12x128xi1>, vector<12x128xf32>
    %33 = arith.maximumf %25, %32 : vector<12x128xf32>
    %34 = vector.extract_strided_slice %33 {offsets = [0, 2], sizes = [12, 126], strides = [1, 1]} : vector<12x128xf32> to vector<12x126xf32>
    %35 = vector.extract_strided_slice %33 {offsets = [0, 0], sizes = [12, 2], strides = [1, 1]} : vector<12x128xf32> to vector<12x2xf32>
    %36 = tpu.concatenate %34, %35 in 1 : vector<12x126xf32>, vector<12x2xf32> -> vector<12x128xf32>
    %cst_5 = arith.constant 0xFF800000 : f32
    %37 = vector.shape_cast %20 : vector<1x128xi1> to vector<1x128xi1>
    %38 = vector.broadcast %37 : vector<1x128xi1> to vector<12x128xi1>
    %39 = vector.broadcast %cst_5 : f32 to vector<12x128xf32>
    %40 = arith.select %38, %36, %39 : vector<12x128xi1>, vector<12x128xf32>
    %41 = arith.maximumf %33, %40 : vector<12x128xf32>
    %42 = vector.extract_strided_slice %25 {offsets = [0, 127], sizes = [12, 1], strides = [1, 1]} : vector<12x128xf32> to vector<12x1xf32>
    %43 = vector.extract_strided_slice %25 {offsets = [0, 0], sizes = [12, 127], strides = [1, 1]} : vector<12x128xf32> to vector<12x127xf32>
    %44 = tpu.concatenate %42, %43 in 1 : vector<12x1xf32>, vector<12x127xf32> -> vector<12x128xf32>
    %cst_6 = arith.constant 0xFF800000 : f32
    %45 = vector.shape_cast %22 : vector<1x128xi1> to vector<1x128xi1>
    %46 = vector.broadcast %45 : vector<1x128xi1> to vector<12x128xi1>
    %47 = vector.broadcast %cst_6 : f32 to vector<12x128xf32>
    %48 = arith.select %46, %44, %47 : vector<12x128xi1>, vector<12x128xf32>
    %49 = arith.maximumf %25, %48 : vector<12x128xf32>
    %50 = vector.extract_strided_slice %49 {offsets = [0, 126], sizes = [12, 2], strides = [1, 1]} : vector<12x128xf32> to vector<12x2xf32>
    %51 = vector.extract_strided_slice %49 {offsets = [0, 0], sizes = [12, 126], strides = [1, 1]} : vector<12x128xf32> to vector<12x126xf32>
    %52 = tpu.concatenate %50, %51 in 1 : vector<12x2xf32>, vector<12x126xf32> -> vector<12x128xf32>
    %cst_7 = arith.constant 0xFF800000 : f32
    %53 = vector.shape_cast %24 : vector<1x128xi1> to vector<1x128xi1>
    %54 = vector.broadcast %53 : vector<1x128xi1> to vector<12x128xi1>
    %55 = vector.broadcast %cst_7 : f32 to vector<12x128xf32>
    %56 = arith.select %54, %52, %55 : vector<12x128xi1>, vector<12x128xf32>
    %57 = arith.maximumf %49, %56 : vector<12x128xf32>
    %58 = arith.maximumf %41, %57 : vector<12x128xf32>
    %c0_8 = arith.constant 0 : index
    %c0_9 = arith.constant 0 : index
    %59 = vector.load %arg3[%c0_8, %c0_9] : memref<12x128xf32, #tpu.memory_space<vmem>>, vector<12x128xf32>
    tpu.vector_store %arg3[%c0_8, %c0_9], %58 {strides = array<i32>} : memref<12x128xf32, #tpu.memory_space<vmem>>, vector<12x128xf32>,
    %c0_10 = arith.constant 0 : index
    %c0_11 = arith.constant 0 : index
    %60 = vector.load %arg2[%c0_10, %c0_11] : memref<12x128xf32, #tpu.memory_space<vmem>>, vector<12x128xf32>
    %61 = vector.extract_strided_slice %60 {offsets = [0, 1], sizes = [12, 127], strides = [1, 1]} : vector<12x128xf32> to vector<12x127xf32>
    %62 = vector.extract_strided_slice %60 {offsets = [0, 0], sizes = [12, 1], strides = [1, 1]} : vector<12x128xf32> to vector<12x1xf32>
    %63 = tpu.concatenate %61, %62 in 1 : vector<12x127xf32>, vector<12x1xf32> -> vector<12x128xf32>
    %cst_12 = arith.constant 0xFF800000 : f32
    %64 = vector.shape_cast %18 : vector<1x128xi1> to vector<1x128xi1>
    %65 = vector.broadcast %64 : vector<1x128xi1> to vector<12x128xi1>
    %66 = vector.broadcast %cst_12 : f32 to vector<12x128xf32>
    %67 = arith.select %65, %63, %66 : vector<12x128xi1>, vector<12x128xf32>
    %68 = arith.maximumf %60, %67 : vector<12x128xf32>
    %69 = vector.extract_strided_slice %68 {offsets = [0, 2], sizes = [12, 126], strides = [1, 1]} : vector<12x128xf32> to vector<12x126xf32>
    %70 = vector.extract_strided_slice %68 {offsets = [0, 0], sizes = [12, 2], strides = [1, 1]} : vector<12x128xf32> to vector<12x2xf32>
    %71 = tpu.concatenate %69, %70 in 1 : vector<12x126xf32>, vector<12x2xf32> -> vector<12x128xf32>
    %cst_13 = arith.constant 0xFF800000 : f32
    %72 = vector.shape_cast %20 : vector<1x128xi1> to vector<1x128xi1>
    %73 = vector.broadcast %72 : vector<1x128xi1> to vector<12x128xi1>
    %74 = vector.broadcast %cst_13 : f32 to vector<12x128xf32>
    %75 = arith.select %73, %71, %74 : vector<12x128xi1>, vector<12x128xf32>
    %76 = arith.maximumf %68, %75 : vector<12x128xf32>
    %77 = vector.extract_strided_slice %60 {offsets = [0, 127], sizes = [12, 1], strides = [1, 1]} : vector<12x128xf32> to vector<12x1xf32>
    %78 = vector.extract_strided_slice %60 {offsets = [0, 0], sizes = [12, 127], strides = [1, 1]} : vector<12x128xf32> to vector<12x127xf32>
    %79 = tpu.concatenate %77, %78 in 1 : vector<12x1xf32>, vector<12x127xf32> -> vector<12x128xf32>
    %cst_14 = arith.constant 0xFF800000 : f32
    %80 = vector.shape_cast %22 : vector<1x128xi1> to vector<1x128xi1>
    %81 = vector.broadcast %80 : vector<1x128xi1> to vector<12x128xi1>
    %82 = vector.broadcast %cst_14 : f32 to vector<12x128xf32>
    %83 = arith.select %81, %79, %82 : vector<12x128xi1>, vector<12x128xf32>
    %84 = arith.maximumf %60, %83 : vector<12x128xf32>
    %85 = vector.extract_strided_slice %84 {offsets = [0, 126], sizes = [12, 2], strides = [1, 1]} : vector<12x128xf32> to vector<12x2xf32>
    %86 = vector.extract_strided_slice %84 {offsets = [0, 0], sizes = [12, 126], strides = [1, 1]} : vector<12x128xf32> to vector<12x126xf32>
    %87 = tpu.concatenate %85, %86 in 1 : vector<12x2xf32>, vector<12x126xf32> -> vector<12x128xf32>
    %cst_15 = arith.constant 0xFF800000 : f32
    %88 = vector.shape_cast %24 : vector<1x128xi1> to vector<1x128xi1>
    %89 = vector.broadcast %88 : vector<1x128xi1> to vector<12x128xi1>
    %90 = vector.broadcast %cst_15 : f32 to vector<12x128xf32>
    %91 = arith.select %89, %87, %90 : vector<12x128xi1>, vector<12x128xf32>
    %92 = arith.maximumf %84, %91 : vector<12x128xf32>
    %93 = arith.maximumf %76, %92 : vector<12x128xf32>
    %c0_16 = arith.constant 0 : index
    %c0_17 = arith.constant 0 : index
    %94 = vector.load %arg4[%c0_16, %c0_17] : memref<12x128xf32, #tpu.memory_space<vmem>>, vector<12x128xf32>
    tpu.vector_store %arg4[%c0_16, %c0_17], %93 {strides = array<i32>} : memref<12x128xf32, #tpu.memory_space<vmem>>, vector<12x128xf32>,
    return
  }
  func.func @transform_0(%arg0: i32) -> (i32, i32) {
    %c0_i32 = arith.constant 0 : i32
    %c0_i32_0 = arith.constant 0 : i32
    return %arg0, %c0_i32 : i32, i32
  }
  func.func @transform_1(%arg0: i32) -> (i32, i32) {
    %c0_i32 = arith.constant 0 : i32
    %c0_i32_0 = arith.constant 0 : i32
    return %arg0, %c0_i32 : i32, i32
  }
  func.func @transform_2(%arg0: i32) -> (i32, i32) {
    %c0_i32 = arith.constant 0 : i32
    %c0_i32_0 = arith.constant 0 : i32
    return %arg0, %c0_i32 : i32, i32
  }
  func.func @transform_3(%arg0: i32) -> (i32, i32) {
    %c0_i32 = arith.constant 0 : i32
    %c0_i32_0 = arith.constant 0 : i32
    return %arg0, %c0_i32 : i32, i32
  }
}

</mosaic_0001>

<llo_original>
// kernel: tpu_custom_call.1
$region0: #{tpu_custom_call.1}
  #allocation0 [shape = 'u32[]', space=smem, size = 0x4, offset = 0x4, fixed_abs, tag = 'smem constant byte address 0x4 - core index']
  #allocation1 [shape = 'u32[144,128]{1,0:T(1,128)}', space=vmem, size = 0x12000, scoped, tag = 'internal scratch']
  %s0 = inlined_call_operand.hbm [shape: f32[12,128], index: 0, kind: input, shape index: {}]
  %s1 = inlined_call_operand.hbm [shape: f32[12,128], index: 1, kind: input, shape index: {}]
  %s2 = inlined_call_operand.hbm [shape: f32[12,128], index: 2, kind: output, shape index: {0}]
  %s3 = inlined_call_operand.hbm [shape: f32[12,128], index: 3, kind: output, shape index: {1}]
  %4 = xla_tuple %s2, %s3
  %s5 = sld [smem:[#allocation0]]
  $region34: #{tpu_custom_call.1} parent=0
    _
  %s7 = ssub.s32 1, %s5
  %s8 = scalar_select 0, %s7, %s5
  $region1: #{tpu_custom_call.1} parent=0
    #allocation2 [shape = 'u8[8192]{0}', space=vmem, size = 0x2000, scoped, tag = 'input window, operand 0, single buffered']
    #allocation3 [shape = 's32[1]{0}', space=sflag, size = 0x4, scoped, tag = 'scoped memory for tpu_custom_call.1']
    #allocation4 [shape = 's32[1]{0}', space=sflag, size = 0x4, scoped, tag = 'scoped memory for tpu_custom_call.1']
    #allocation5 [shape = 'u8[8192]{0}', space=vmem, size = 0x2000, scoped, tag = 'input window, operand 1, single buffered']
    #allocation6 [shape = 's32[1]{0}', space=sflag, size = 0x4, scoped, tag = 'scoped memory for tpu_custom_call.1']
    #allocation7 [shape = 'u8[8192]{0}', space=vmem, size = 0x2000, scoped, tag = 'output window, operand 0, single buffered']
    #allocation8 [shape = 'u8[8192]{0}', space=vmem, size = 0x2000, scoped, tag = 'output window, operand 1, single buffered']
    #allocation9 [shape = 's32[1]{0}', space=sflag, size = 0x4, scoped, tag = 'scoped memory for tpu_custom_call.1']
    %9 = vsyncpa [#allocation3], 0
    %10 = vsyncpa [#allocation6], 0
    %11 = vsyncpa [#allocation4], 0
    %12 = vsyncpa [#allocation9], 0
    // Predicated region
    $region2: #{tpu_custom_call.1} parent=1 // pred_check
      _
    $region3: #{tpu_custom_call.1} parent=1 // pred_check_branch
      %14 = sbr.rel (0) target = $region5
    $region4: #{tpu_custom_call.1} parent=1 // pred_region
      %s16 = ssub.s32 256, 256
      %17 = vsyncadd [#allocation3], %s16
      %s18 = sshll.u32 [#allocation2], 4
      %s19 = int_to_ptr.vmem [resolvable:$true] %s18
      %24 = dma.hbm_to_vmem [thread:$0]  %s0, 256, %s19, [#allocation3], 128, 128, 8
    $region5: #{tpu_custom_call.1} parent=1 // pred_fallthru
      _
    // Predicated region
    $region6: #{tpu_custom_call.1} parent=1 // pred_check
      _
    $region7: #{tpu_custom_call.1} parent=1 // pred_check_branch
      %26 = sbr.rel (0) target = $region9
    $region8: #{tpu_custom_call.1} parent=1 // pred_region
      %s28 = ssub.s32 256, 256
      %29 = vsyncadd [#allocation6], %s28
      %s30 = sshll.u32 [#allocation5], 4
      %s31 = int_to_ptr.vmem [resolvable:$true] %s30
      %36 = dma.hbm_to_vmem [thread:$0]  %s1, 256, %s31, [#allocation6], 128, 128, 8
    $region9: #{tpu_custom_call.1} parent=1 // pred_fallthru
      _
    // Predicated region
    $region10: #{tpu_custom_call.1} parent=1 // pred_check
      _
    $region11: #{tpu_custom_call.1} parent=1 // pred_check_branch
      %38 = sbr.rel (0) target = $region13
    $region12: #{tpu_custom_call.1} parent=1 // pred_region
      %39 = dma.done [#allocation3], 256
    $region13: #{tpu_custom_call.1} parent=1 // pred_fallthru
      _
    // Predicated region
    $region14: #{tpu_custom_call.1} parent=1 // pred_check
      _
    $region15: #{tpu_custom_call.1} parent=1 // pred_check_branch
      %41 = sbr.rel (0) target = $region17
    $region16: #{tpu_custom_call.1} parent=1 // pred_region
      %42 = dma.done [#allocation6], 256
    $region17: #{tpu_custom_call.1} parent=1 // pred_fallthru
      _
    %v43 = vlaneseq
    %v44 = vand.u32 %v43, 127
    %vm45 = vcmp.lt.s32.totalorder %v44, 0
    %v46 = vsub.s32 0, %v44
    %v47 = vsel %vm45, %v46, %v44
    %v48 = vshrl.u32 %v47, 4
    %v49 = vand.u32 %v47, 15
    %v50 = vsub.s32 0, %v49
    %v51 = vsel %vm45, %v50, %v49
    %vm52 = vcmp.ne.s32.totalorder %v51, 0
    %vm53 = vcmp.lt.s32.totalorder %v51, 0
    %vm54 = vmand %vm53, %vm52
    %v55 = vadd.s32 %v51, 16
    %v56 = vsel %vm54, %v55, %v51
    %vm57 = vcmp.lt.s32.totalorder %v56, 15
    %vm58 = vcmp.lt.s32.totalorder %v56, 14
    %vm59 = vcmp.ge.s32.totalorder %v56, 1
    %vm60 = vcmp.ge.s32.totalorder %v56, 2
    %v61 = vld [vmem:[#allocation2] sm:$0xff]
    %v62 = vld [vmem:[#allocation2 + $0x8] sm:$0xf]
    %65 = vrot.lane.b32.xlu0 %v61, 127
    %v66 = vpop.permute.xlu0 %65
    %67 = vrot.lane.b32.xlu0 %v62, 127
    %v68 = vpop.permute.xlu0 %67
    %v71 = vsel %vm57, 1, 0
    %vm72 = vcmp.eq.s32.totalorder %v71, 1
    %v73 = vsel %vm72, %v66, -inf
    %v74 = vsel %vm72, %v68, -inf
    %v75 = vmax.f32 %v61, %v73
    %v76 = vmax.f32 %v62, %v74
    %79 = vrot.lane.b32.xlu0 %v75, 126
    %v80 = vpop.permute.xlu0 %79
    %81 = vrot.lane.b32.xlu0 %v76, 126
    %v82 = vpop.permute.xlu0 %81
    %v85 = vsel %vm58, 1, 0
    %vm86 = vcmp.eq.s32.totalorder %v85, 1
    %v87 = vsel %vm86, %v80, -inf
    %v88 = vsel %vm86, %v82, -inf
    %v89 = vmax.f32 %v75, %v87
    %v90 = vmax.f32 %v76, %v88
    %91 = vrot.lane.b32.xlu0 %v61, 1
    %v92 = vpop.permute.xlu0 %91
    %93 = vrot.lane.b32.xlu0 %v62, 1
    %v94 = vpop.permute.xlu0 %93
    %v97 = vsel %vm59, 1, 0
    %vm98 = vcmp.eq.s32.totalorder %v97, 1
    %v99 = vsel %vm98, %v92, -inf
    %v100 = vsel %vm98, %v94, -inf
    %v101 = vmax.f32 %v61, %v99
    %v102 = vmax.f32 %v62, %v100
    %105 = vrot.lane.b32.xlu0 %v101, 2
    %v106 = vpop.permute.xlu0 %105
    %107 = vrot.lane.b32.xlu0 %v102, 2
    %v108 = vpop.permute.xlu0 %107
    %v111 = vsel %vm60, 1, 0
    %vm112 = vcmp.eq.s32.totalorder %v111, 1
    %v113 = vsel %vm112, %v106, -inf
    %v114 = vsel %vm112, %v108, -inf
    %v115 = vmax.f32 %v101, %v113
    %v116 = vmax.f32 %v102, %v114
    %v117 = vmax.f32 %v89, %v115
    %v118 = vmax.f32 %v90, %v116
    %119 = vst [vmem:[#allocation7] sm:$0xff] %v117
    %120 = vst [vmem:[#allocation7 + $0x8] sm:$0xf] %v118
    %v121 = vld [vmem:[#allocation5] sm:$0xff]
    %v122 = vld [vmem:[#allocation5 + $0x8] sm:$0xf]
    %125 = vrot.lane.b32.xlu0 %v121, 127
    %v126 = vpop.permute.xlu0 %125
    %127 = vrot.lane.b32.xlu0 %v122, 127
    %v128 = vpop.permute.xlu0 %127
    %v131 = vsel %vm72, %v126, -inf
    %v132 = vsel %vm72, %v128, -inf
    %v133 = vmax.f32 %v121, %v131
    %v134 = vmax.f32 %v122, %v132
    %137 = vrot.lane.b32.xlu0 %v133, 126
    %v138 = vpop.permute.xlu0 %137
    %139 = vrot.lane.b32.xlu0 %v134, 126
    %v140 = vpop.permute.xlu0 %139
    %v143 = vsel %vm86, %v138, -inf
    %v144 = vsel %vm86, %v140, -inf
    %v145 = vmax.f32 %v133, %v143
    %v146 = vmax.f32 %v134, %v144
    %147 = vrot.lane.b32.xlu0 %v121, 1
    %v148 = vpop.permute.xlu0 %147
    %149 = vrot.lane.b32.xlu0 %v122, 1
    %v150 = vpop.permute.xlu0 %149
    %v153 = vsel %vm98, %v148, -inf
    %v154 = vsel %vm98, %v150, -inf
    %v155 = vmax.f32 %v121, %v153
    %v156 = vmax.f32 %v122, %v154
    %159 = vrot.lane.b32.xlu0 %v155, 2
    %v160 = vpop.permute.xlu0 %159
    %161 = vrot.lane.b32.xlu0 %v156, 2
    %v162 = vpop.permute.xlu0 %161
    %v165 = vsel %vm112, %v160, -inf
    %v166 = vsel %vm112, %v162, -inf
    %v167 = vmax.f32 %v155, %v165
    %v168 = vmax.f32 %v156, %v166
    %v169 = vmax.f32 %v145, %v167
    %v170 = vmax.f32 %v146, %v168
    %171 = vst [vmem:[#allocation8] sm:$0xff] %v169
    %172 = vst [vmem:[#allocation8 + $0x8] sm:$0xf] %v170
    // Predicated region
    $region18: #{tpu_custom_call.1} parent=1 // pred_check
      _
    $region19: #{tpu_custom_call.1} parent=1 // pred_check_branch
      %174 = sbr.rel (0) target = $region21
    $region20: #{tpu_custom_call.1} parent=1 // pred_region
      %s176 = ssub.s32 256, 256
      %177 = vsyncadd [#allocation4], %s176
      %s178 = sshll.u32 [#allocation7], 4
      %s179 = int_to_ptr.vmem [resolvable:$true] %s178
      %184 = dma.vmem_to_hbm [thread:$0]  %s179, 256, %s2, [#allocation4], 128, 128, 8
    $region21: #{tpu_custom_call.1} parent=1 // pred_fallthru
      _
    // Predicated region
    $region22: #{tpu_custom_call.1} parent=1 // pred_check
      _
    $region23: #{tpu_custom_call.1} parent=1 // pred_check_branch
      %186 = sbr.rel (0) target = $region25
    $region24: #{tpu_custom_call.1} parent=1 // pred_region
      %s188 = ssub.s32 256, 256
      %189 = vsyncadd [#allocation9], %s188
      %s190 = sshll.u32 [#allocation8], 4
      %s191 = int_to_ptr.vmem [resolvable:$true] %s190
      %196 = dma.vmem_to_hbm [thread:$0]  %s191, 256, %s3, [#allocation9], 128, 128, 8
    $region25: #{tpu_custom_call.1} parent=1 // pred_fallthru
      _
    // Predicated region
    $region26: #{tpu_custom_call.1} parent=1 // pred_check
      _
    $region27: #{tpu_custom_call.1} parent=1 // pred_check_branch
      %198 = sbr.rel (0) target = $region29
    $region28: #{tpu_custom_call.1} parent=1 // pred_region
      %199 = dma.done [#allocation4], 256
    $region29: #{tpu_custom_call.1} parent=1 // pred_fallthru
      _
    // Predicated region
    $region30: #{tpu_custom_call.1} parent=1 // pred_check
      _
    $region31: #{tpu_custom_call.1} parent=1 // pred_check_branch
      %201 = sbr.rel (0) target = $region33
    $region32: #{tpu_custom_call.1} parent=1 // pred_region
      %202 = dma.done [#allocation9], 256
    $region33: #{tpu_custom_call.1} parent=1 // pred_fallthru
      _
    %203 = vsyncpa [#allocation3], 1
    %204 = vsyncpa [#allocation6], 1
    %205 = vsyncpa [#allocation4], 1
    %206 = vsyncpa [#allocation9], 1

</llo_original>
